<compile_context>
chip_gen: v5e
topology: v5e:2x2
jax: 0.10.0
libtpu: 0.0.40
codegen_flags: <defaults>
</compile_context>

<pallas_src>
import functools

import jax
import jax.numpy as jnp
import numpy as np
from jax.experimental import pallas as pl
from jax.experimental.pallas import tpu as pltpu

LANE = 128  # TPU lane width; all feature dims are zero-padded to this.


def _gcn_tower_kernel(a_ref, x_ref, w_ref, vec_ref, out_ref, *, n_layers):
    """One batched-graph instance per grid step.

    a_ref   : (1, N, N)        adjacency with self-loops
    x_ref   : (1, N, 128)      node features, feature dim zero-padded to 128
    w_ref   : (L, 128, 256)    per layer [Wg | Wr], zero-padded
    vec_ref : (4L, 128)        per layer rows: bg, br, bn_scale, bn_shift
    out_ref : (1, N, 128)      node features after the GCN tower (padded lanes = 0)
    """
    a = a_ref[0]          # (N, N)
    h = x_ref[0]          # (N, 128)
    for l in range(n_layers):            # static unroll over layers
        w = w_ref[l]                                                   # (128, 256)
        z = jnp.dot(h, w, preferred_element_type=jnp.float32)          # (N, 256)
        zg = z[:, :LANE]                                               # graphconv half
        zr = z[:, LANE:]                                               # residual half
        bg = vec_ref[4 * l + 0]
        br = vec_ref[4 * l + 1]
        s = vec_ref[4 * l + 2]
        t = vec_ref[4 * l + 3]
        agg = jnp.dot(a, zg, preferred_element_type=jnp.float32) + bg  # A @ (h @ Wg) + b
        agg = jnp.maximum(agg, 0.0)                                    # GraphConv activation
        res = jnp.maximum(zr + br, 0.0)                                # ReLU(Linear(h))
        # Dropout(p=0.0) == identity; folded BatchNorm1d (running stats).
        h = (agg + res) * s + t
    out_ref[0] = h


def gcn_forward(adj, feats, layer_params, *, eps=1e-5, interpret=False):
    """adj: (B, N, N) float; feats: (B, N, F_in);
    layer_params: list of (Wg, bg, Wr, br, gamma, beta, mean, var), weights (in, out).
    Returns (B, N, out_feats_last)."""
    B, N, _ = adj.shape
    n_layers = len(layer_params)
    out_dim = layer_params[-1][0].shape[1]

    # ---- fold BN + pad + pack parameters at trace time (outside the kernel) ----
    w_slabs, vec_rows = [], []
    for (wg, bg, wr, br, gamma, beta, mean, var) in layer_params:
        f_in, f_out = wg.shape
        assert f_in <= LANE and f_out <= LANE
        s = gamma * jax.lax.rsqrt(var + eps)
        t = beta - mean * s

        def pad_w(w):
            return jnp.pad(w.astype(jnp.float32),
                           ((0, LANE - f_in), (0, LANE - f_out)))

        def pad_v(v):
            return jnp.pad(jnp.reshape(v.astype(jnp.float32), (-1,)),
                           (0, LANE - f_out))

        w_slabs.append(jnp.concatenate([pad_w(wg), pad_w(wr)], axis=1))  # (128, 256)
        # Padded lanes of the shift are zero -> padded feature columns stay exactly 0.
        vec_rows += [pad_v(bg), pad_v(br), pad_v(s), pad_v(t)]

    w_all = jnp.stack(w_slabs, axis=0)          # (L, 128, 256)
    vec_all = jnp.stack(vec_rows, axis=0)       # (4L, 128)

    f_in0 = layer_params[0][0].shape[0]
    x_p = jnp.pad(feats.astype(jnp.float32), ((0, 0), (0, 0), (0, LANE - f_in0)))
    adj = adj.astype(jnp.float32)

    flops = int(B * n_layers * (2 * N * LANE * (2 * LANE) + 2 * N * N * LANE + 6 * N * LANE))
    bytes_accessed = int(4 * (adj.size + x_p.size + w_all.size + vec_all.size + B * N * LANE))

    kernel = functools.partial(_gcn_tower_kernel, n_layers=n_layers)
    out = pl.pallas_call(
        kernel,
        out_shape=jax.ShapeDtypeStruct((B, N, LANE), jnp.float32),
        grid=(B,),
        in_specs=[
            pl.BlockSpec((1, N, N), lambda b: (b, 0, 0)),                     # adjacency
            pl.BlockSpec((1, N, LANE), lambda b: (b, 0, 0)),                  # features
            pl.BlockSpec((n_layers, LANE, 2 * LANE), lambda b: (0, 0, 0)),    # weights (resident)
            pl.BlockSpec((4 * n_layers, LANE), lambda b: (0, 0)),             # bias/BN slab
        ],
        out_specs=pl.BlockSpec((1, N, LANE), lambda b: (b, 0, 0)),
        compiler_params=pltpu.CompilerParams(dimension_semantics=("parallel",)),
        cost_estimate=pl.CostEstimate(flops=flops, transcendentals=0,
                                      bytes_accessed=bytes_accessed),
        interpret=interpret,
    )(adj, x_p, w_all, vec_all)
    return out[:, :, :out_dim]


def init_params(key, in_feats, hidden_feats):
    layers = []
    d_in = in_feats
    for d_out in hidden_feats:
        key, *ks = jax.random.split(key, 9)
        layers.append((
            0.2 * jax.random.normal(ks[0], (d_in, d_out), jnp.float32),      # W_graphconv
            0.1 * jax.random.normal(ks[1], (d_out,), jnp.float32),           # b_graphconv
            0.2 * jax.random.normal(ks[2], (d_in, d_out), jnp.float32),      # W_res
            0.1 * jax.random.normal(ks[3], (d_out,), jnp.float32),           # b_res
            1.0 + 0.1 * jax.random.normal(ks[4], (d_out,), jnp.float32),     # bn gamma
            0.1 * jax.random.normal(ks[5], (d_out,), jnp.float32),           # bn beta
            0.1 * jax.random.normal(ks[6], (d_out,), jnp.float32),           # bn running_mean
            0.5 + jax.random.uniform(ks[7], (d_out,), jnp.float32),          # bn running_var
        ))
        d_in = d_out
    return layers


def reference_numpy(adj, feats, layer_params, eps=1e-5):
    A = np.asarray(adj, np.float64)
    h = np.asarray(feats, np.float64)
    for (wg, bg, wr, br, gamma, beta, mean, var) in layer_params:
        wg, bg, wr, br, gamma, beta, mean, var = [
            np.asarray(p, np.float64) for p in (wg, bg, wr, br, gamma, beta, mean, var)]
        agg = np.maximum(np.matmul(A, h @ wg) + bg, 0.0)
        res = np.maximum(h @ wr + br, 0.0)
        y = agg + res
        h = (y - mean) / np.sqrt(var + eps) * gamma + beta
    return h


if __name__ == "__main__":
    # Small shapes consistent with the module: B=2 independent batched-graph
    # instances (grid axis), N=16 nodes, in_feats=16, hidden_feats=[32, 16].
    B, N = 2, 16
    in_feats = 16
    hidden_feats = [32, 16]

    # Deterministic graphs: per batch a ring (with stride b+1) + self-loops.
    A = np.zeros((B, N, N), np.float32)
    for b in range(B):
        for i in range(N):
            j = (i + 1 + b) % N
            A[b, i, j] = 1.0
            A[b, j, i] = 1.0
        A[b] += np.eye(N, dtype=np.float32)   # dgl.add_self_loop

    key = jax.random.PRNGKey(0)
    key, k_feat = jax.random.split(key)
    feats = jax.random.normal(k_feat, (B, N, in_feats), jnp.float32)
    params = init_params(key, in_feats, hidden_feats)

    out = gcn_forward(jnp.asarray(A), feats, params)
    out = jax.block_until_ready(out)

    ref = reference_numpy(A, np.asarray(feats), params)
    assert out.shape == (B, N, hidden_feats[-1]), out.shape
    assert np.all(np.isfinite(np.asarray(out)))
    np.testing.assert_allclose(np.asarray(out, np.float64), ref, rtol=5e-2, atol=5e-2)

    print("KERNEL_OK")
</pallas_src>

<mosaic_0001>
module attributes {stable_mosaic.version = 11 : i64} {
  func.func @_gcn_tower_kernel(%arg0: i32, %arg1: memref<1x16x16xf32, #tpu.memory_space<vmem>>, %arg2: memref<1x16x128xf32, #tpu.memory_space<vmem>>, %arg3: memref<2x128x256xf32, #tpu.memory_space<vmem>>, %arg4: memref<8x128xf32, #tpu.memory_space<vmem>>, %arg5: memref<1x16x128xf32, #tpu.memory_space<vmem>>) attributes {dimension_semantics = [#tpu.dimension_semantics<parallel>], iteration_bounds = array<i64: 2>, scalar_prefetch = 0 : i64, scratch_operands = 0 : i64, tpu.core_type = #tpu.core_type<tc>, window_params = [{transform_indices = @transform_0, window_bounds = array<i64: 1, 16, 16>}, {transform_indices = @transform_1, window_bounds = array<i64: 1, 16, 128>}, {pipeline_mode = #tpu.pipeline_mode<synchronous>, transform_indices = @transform_2, window_bounds = array<i64: 2, 128, 256>}, {pipeline_mode = #tpu.pipeline_mode<synchronous>, transform_indices = @transform_3, window_bounds = array<i64: 8, 128>}, {transform_indices = @transform_4, window_bounds = array<i64: 1, 16, 128>}]} {
    %c0 = arith.constant 0 : index
    %c0_0 = arith.constant 0 : index
    %c0_1 = arith.constant 0 : index
    %0 = vector.load %arg1[%c0, %c0_0, %c0_1] : memref<1x16x16xf32, #tpu.memory_space<vmem>>, vector<1x16x16xf32>
    %1 = vector.shape_cast %0 : vector<1x16x16xf32> to vector<16x16xf32>
    %c0_2 = arith.constant 0 : index
    %c0_3 = arith.constant 0 : index
    %c0_4 = arith.constant 0 : index
    %2 = vector.load %arg2[%c0_2, %c0_3, %c0_4] : memref<1x16x128xf32, #tpu.memory_space<vmem>>, vector<1x16x128xf32>
    %3 = vector.shape_cast %2 : vector<1x16x128xf32> to vector<16x128xf32>
    %c0_5 = arith.constant 0 : index
    %c0_6 = arith.constant 0 : index
    %c0_7 = arith.constant 0 : index
    %4 = vector.load %arg3[%c0_5, %c0_6, %c0_7] : memref<2x128x256xf32, #tpu.memory_space<vmem>>, vector<1x128x256xf32>
    %5 = vector.shape_cast %4 : vector<1x128x256xf32> to vector<128x256xf32>
    %cst = arith.constant dense<0.000000e+00> : vector<16x256xf32>
    %6 = tpu.matmul %3, %5, %cst {dimension_numbers = #tpu.dot_dimension_numbers<[1], [0], [0], [1], [0, 0, 1, 1], [], []>} : vector<16x128xf32>, vector<128x256xf32>, vector<16x256xf32> -> vector<16x256xf32>
    %7 = vector.extract_strided_slice %6 {offsets = [0, 0], sizes = [16, 128], strides = [1, 1]} : vector<16x256xf32> to vector<16x128xf32>
    %8 = vector.extract_strided_slice %6 {offsets = [0, 128], sizes = [16, 128], strides = [1, 1]} : vector<16x256xf32> to vector<16x128xf32>
    %c0_8 = arith.constant 0 : index
    %c0_9 = arith.constant 0 : index
    %9 = vector.load %arg4[%c0_8, %c0_9] : memref<8x128xf32, #tpu.memory_space<vmem>>, vector<1x128xf32>
    %10 = vector.shape_cast %9 : vector<1x128xf32> to vector<128xf32>
    %c1 = arith.constant 1 : index
    %c0_10 = arith.constant 0 : index
    %11 = vector.load %arg4[%c1, %c0_10] : memref<8x128xf32, #tpu.memory_space<vmem>>, vector<1x128xf32>
    %12 = vector.shape_cast %11 : vector<1x128xf32> to vector<128xf32>
    %c2 = arith.constant 2 : index
    %c0_11 = arith.constant 0 : index
    %13 = vector.load %arg4[%c2, %c0_11] : memref<8x128xf32, #tpu.memory_space<vmem>>, vector<1x128xf32>
    %14 = vector.shape_cast %13 : vector<1x128xf32> to vector<128xf32>
    %c3 = arith.constant 3 : index
    %c0_12 = arith.constant 0 : index
    %15 = vector.load %arg4[%c3, %c0_12] : memref<8x128xf32, #tpu.memory_space<vmem>>, vector<1x128xf32>
    %16 = vector.shape_cast %15 : vector<1x128xf32> to vector<128xf32>
    %cst_13 = arith.constant dense<0.000000e+00> : vector<16x128xf32>
    %17 = tpu.matmul %1, %7, %cst_13 {dimension_numbers = #tpu.dot_dimension_numbers<[1], [0], [0], [1], [0, 0, 1, 1], [], []>} : vector<16x16xf32>, vector<16x128xf32>, vector<16x128xf32> -> vector<16x128xf32>
    %18 = vector.shape_cast %10 : vector<128xf32> to vector<1x128xf32>
    %19 = vector.broadcast %18 : vector<1x128xf32> to vector<16x128xf32>
    %20 = arith.addf %17, %19 : vector<16x128xf32>
    %cst_14 = arith.constant 0.000000e+00 : f32
    %21 = vector.broadcast %cst_14 : f32 to vector<16x128xf32>
    %22 = arith.maximumf %20, %21 : vector<16x128xf32>
    %23 = vector.shape_cast %12 : vector<128xf32> to vector<1x128xf32>
    %24 = vector.broadcast %23 : vector<1x128xf32> to vector<16x128xf32>
    %25 = arith.addf %8, %24 : vector<16x128xf32>
    %cst_15 = arith.constant 0.000000e+00 : f32
    %26 = vector.broadcast %cst_15 : f32 to vector<16x128xf32>
    %27 = arith.maximumf %25, %26 : vector<16x128xf32>
    %28 = arith.addf %22, %27 : vector<16x128xf32>
    %29 = vector.shape_cast %14 : vector<128xf32> to vector<1x128xf32>
    %30 = vector.broadcast %29 : vector<1x128xf32> to vector<16x128xf32>
    %31 = arith.mulf %28, %30 : vector<16x128xf32>
    %32 = vector.shape_cast %16 : vector<128xf32> to vector<1x128xf32>
    %33 = vector.broadcast %32 : vector<1x128xf32> to vector<16x128xf32>
    %34 = arith.addf %31, %33 : vector<16x128xf32>
    %c1_16 = arith.constant 1 : index
    %c0_17 = arith.constant 0 : index
    %c0_18 = arith.constant 0 : index
    %35 = vector.load %arg3[%c1_16, %c0_17, %c0_18] : memref<2x128x256xf32, #tpu.memory_space<vmem>>, vector<1x128x256xf32>
    %36 = vector.shape_cast %35 : vector<1x128x256xf32> to vector<128x256xf32>
    %cst_19 = arith.constant dense<0.000000e+00> : vector<16x256xf32>
    %37 = tpu.matmul %34, %36, %cst_19 {dimension_numbers = #tpu.dot_dimension_numbers<[1], [0], [0], [1], [0, 0, 1, 1], [], []>} : vector<16x128xf32>, vector<128x256xf32>, vector<16x256xf32> -> vector<16x256xf32>
    %38 = vector.extract_strided_slice %37 {offsets = [0, 0], sizes = [16, 128], strides = [1, 1]} : vector<16x256xf32> to vector<16x128xf32>
    %39 = vector.extract_strided_slice %37 {offsets = [0, 128], sizes = [16, 128], strides = [1, 1]} : vector<16x256xf32> to vector<16x128xf32>
    %c4 = arith.constant 4 : index
    %c0_20 = arith.constant 0 : index
    %40 = vector.load %arg4[%c4, %c0_20] : memref<8x128xf32, #tpu.memory_space<vmem>>, vector<1x128xf32>
    %41 = vector.shape_cast %40 : vector<1x128xf32> to vector<128xf32>
    %c5 = arith.constant 5 : index
    %c0_21 = arith.constant 0 : index
    %42 = vector.load %arg4[%c5, %c0_21] : memref<8x128xf32, #tpu.memory_space<vmem>>, vector<1x128xf32>
    %43 = vector.shape_cast %42 : vector<1x128xf32> to vector<128xf32>
    %c6 = arith.constant 6 : index
    %c0_22 = arith.constant 0 : index
    %44 = vector.load %arg4[%c6, %c0_22] : memref<8x128xf32, #tpu.memory_space<vmem>>, vector<1x128xf32>
    %45 = vector.shape_cast %44 : vector<1x128xf32> to vector<128xf32>
    %c7 = arith.constant 7 : index
    %c0_23 = arith.constant 0 : index
    %46 = vector.load %arg4[%c7, %c0_23] : memref<8x128xf32, #tpu.memory_space<vmem>>, vector<1x128xf32>
    %47 = vector.shape_cast %46 : vector<1x128xf32> to vector<128xf32>
    %cst_24 = arith.constant dense<0.000000e+00> : vector<16x128xf32>
    %48 = tpu.matmul %1, %38, %cst_24 {dimension_numbers = #tpu.dot_dimension_numbers<[1], [0], [0], [1], [0, 0, 1, 1], [], []>} : vector<16x16xf32>, vector<16x128xf32>, vector<16x128xf32> -> vector<16x128xf32>
    %49 = vector.shape_cast %41 : vector<128xf32> to vector<1x128xf32>
    %50 = vector.broadcast %49 : vector<1x128xf32> to vector<16x128xf32>
    %51 = arith.addf %48, %50 : vector<16x128xf32>
    %cst_25 = arith.constant 0.000000e+00 : f32
    %52 = vector.broadcast %cst_25 : f32 to vector<16x128xf32>
    %53 = arith.maximumf %51, %52 : vector<16x128xf32>
    %54 = vector.shape_cast %43 : vector<128xf32> to vector<1x128xf32>
    %55 = vector.broadcast %54 : vector<1x128xf32> to vector<16x128xf32>
    %56 = arith.addf %39, %55 : vector<16x128xf32>
    %cst_26 = arith.constant 0.000000e+00 : f32
    %57 = vector.broadcast %cst_26 : f32 to vector<16x128xf32>
    %58 = arith.maximumf %56, %57 : vector<16x128xf32>
    %59 = arith.addf %53, %58 : vector<16x128xf32>
    %60 = vector.shape_cast %45 : vector<128xf32> to vector<1x128xf32>
    %61 = vector.broadcast %60 : vector<1x128xf32> to vector<16x128xf32>
    %62 = arith.mulf %59, %61 : vector<16x128xf32>
    %63 = vector.shape_cast %47 : vector<128xf32> to vector<1x128xf32>
    %64 = vector.broadcast %63 : vector<1x128xf32> to vector<16x128xf32>
    %65 = arith.addf %62, %64 : vector<16x128xf32>
    %c0_27 = arith.constant 0 : index
    %c0_28 = arith.constant 0 : index
    %c0_29 = arith.constant 0 : index
    %66 = vector.load %arg5[%c0_27, %c0_28, %c0_29] : memref<1x16x128xf32, #tpu.memory_space<vmem>>, vector<1x16x128xf32>
    %67 = vector.shape_cast %66 : vector<1x16x128xf32> to vector<16x128xf32>
    %68 = vector.shape_cast %65 : vector<16x128xf32> to vector<1x16x128xf32>
    tpu.vector_store %arg5[%c0_27, %c0_28, %c0_29], %68 {strides = array<i32>} : memref<1x16x128xf32, #tpu.memory_space<vmem>>, vector<1x16x128xf32>,
    return
  }
  func.func @transform_0(%arg0: i32) -> (i32, i32, i32) {
    %c0_i32 = arith.constant 0 : i32
    %c0_i32_0 = arith.constant 0 : i32
    %c0_i32_1 = arith.constant 0 : i32
    return %arg0, %c0_i32, %c0_i32_0 : i32, i32, i32
  }
  func.func @transform_1(%arg0: i32) -> (i32, i32, i32) {
    %c0_i32 = arith.constant 0 : i32
    %c0_i32_0 = arith.constant 0 : i32
    %c0_i32_1 = arith.constant 0 : i32
    return %arg0, %c0_i32, %c0_i32_0 : i32, i32, i32
  }
  func.func @transform_2(%arg0: i32) -> (i32, i32, i32) {
    %c0_i32 = arith.constant 0 : i32
    %c0_i32_0 = arith.constant 0 : i32
    %c0_i32_1 = arith.constant 0 : i32
    %c0_i32_2 = arith.constant 0 : i32
    return %c0_i32, %c0_i32_0, %c0_i32_1 : i32, i32, i32
  }
  func.func @transform_3(%arg0: i32) -> (i32, i32) {
    %c0_i32 = arith.constant 0 : i32
    %c0_i32_0 = arith.constant 0 : i32
    %c0_i32_1 = arith.constant 0 : i32
    return %c0_i32, %c0_i32_0 : i32, i32
  }
  func.func @transform_4(%arg0: i32) -> (i32, i32, i32) {
    %c0_i32 = arith.constant 0 : i32
    %c0_i32_0 = arith.constant 0 : i32
    %c0_i32_1 = arith.constant 0 : i32
    return %arg0, %c0_i32, %c0_i32_0 : i32, i32, i32
  }
}

</mosaic_0001>

<llo_original>
// kernel: tpu_custom_call.1
$region0: #{tpu_custom_call.1}
  #allocation0 [shape = 'u32[]', space=smem, size = 0x4, offset = 0x4, fixed_abs, tag = 'smem constant byte address 0x4 - core index']
  #allocation1 [shape = 'u32[72,128]{1,0:T(1,128)}', space=vmem, size = 0x9000, scoped, tag = 'internal scratch']
  %s0 = inlined_call_operand.hbm [shape: f32[2,16,16], index: 0, kind: input, shape index: {}]
  %s1 = inlined_call_operand.hbm [shape: f32[2,16,128], index: 1, kind: input, shape index: {}]
  %s2 = inlined_call_operand.hbm [shape: f32[2,128,256], index: 2, kind: input, shape index: {}]
  %s3 = inlined_call_operand.hbm [shape: f32[8,128], index: 3, kind: input, shape index: {}]
  %s4 = inlined_call_operand.hbm [shape: f32[2,16,128], index: 4, kind: output, shape index: {}]
  %s5 = sld [smem:[#allocation0]]
  $region65: #{tpu_custom_call.1} parent=0
    _
  %s7 = ssub.s32 1, %s5
  %s8 = scalar_select 0, %s7, %s5
  $region1: #{tpu_custom_call.1} parent=0
    #allocation2 [shape = 'u8[16384]{0}', space=vmem, size = 0x4000, scoped, tag = 'input window, operand 0']
    #allocation3 [shape = 's32[2]{0}', space=sflag, size = 0x8, scoped, tag = 'scoped memory for tpu_custom_call.1']
    #allocation4 [shape = 's32[2]{0}', space=sflag, size = 0x8, scoped, tag = 'scoped memory for tpu_custom_call.1']
    #allocation5 [shape = 'u8[16384]{0}', space=vmem, size = 0x4000, scoped, tag = 'input window, operand 1']
    #allocation6 [shape = 's32[2]{0}', space=sflag, size = 0x8, scoped, tag = 'scoped memory for tpu_custom_call.1']
    #allocation7 [shape = 'u8[262144]{0}', space=vmem, size = 0x40000, scoped, tag = 'input window, operand 2, single buffered']
    #allocation8 [shape = 'u8[4096]{0}', space=vmem, size = 0x1000, scoped, tag = 'input window, operand 3, single buffered']
    #allocation9 [shape = 's32[1]{0}', space=sflag, size = 0x4, scoped, tag = 'scoped memory for tpu_custom_call.1']
    #allocation10 [shape = 'u8[16384]{0}', space=vmem, size = 0x4000, scoped, tag = 'output window, operand 0']
    %9 = vsyncpa [#allocation3], 0
    %s10 = scalar_lea.sflag [#allocation3], 1
    %11 = vsyncpa %s10, 0
    %12 = vsyncpa [#allocation6], 0
    %s13 = scalar_lea.sflag [#allocation6], 1
    %14 = vsyncpa %s13, 0
    %15 = vsyncpa [#allocation9], 0
    %16 = vsyncpa [#allocation4], 0
    %s17 = scalar_lea.sflag [#allocation4], 1
    %18 = vsyncpa %s17, 0
    loop: start=0, step=1, limit=4
    $region2: #{tpu_custom_call.1} parent=1 // loop_pre_header
      _
    $region3: #{tpu_custom_call.1} parent=1 // loop_header
      %s20 = sphi 0, %s24
      %p21 = scmp.ge.s32.totalorder %s20, 4
      %s30 = sphi 0, %s32
      %s33 = sphi 0, %s30
      %s34 = sphi 0, %s33
      %s50 = sphi 0, %s34
      %s56 = sphi 0, %s58
      %s59 = sphi 0, %s56
      %s60 = sphi 0, %s59
      %s76 = sphi 0, %s60
      %s80 = sphi 0, %s80
      %s82 = sphi 0, %s80
      %s83 = sphi 0, %s82
      %s97 = sphi 0, %s83
      %s101 = sphi 0, %s101
      %s103 = sphi 0, %s101
      %s104 = sphi 0, %s103
      %s118 = sphi 0, %s104
      %s124 = sphi 0, %s126
      %s127 = sphi 0, %s124
      %s128 = sphi 0, %s127
      %s144 = sphi 0, %s128
    $region4: #{tpu_custom_call.1} parent=1 // loop_header_branch
      %23 = sbr.rel (%p21) target = $region8
    $region5: #{tpu_custom_call.1} parent=1 // loop_body
      %s25 = ssub.s32 %s20, 1
      %s26 = ssub.s32 %s20, 2
      %s27 = sadd.s32 %s20, 1
      %s28 = ssub.s32 %s20, %s27
      %p29 = scmp.eq.s32.totalorder %s28, 0
      %s31 = sadd.s32 %s30, 1
      %s32 = scalar_select %p29, %s30, %s31
      %p35 = pneg %p29
      %p36 = scmp.eq.s32.totalorder %s20, 1
      %p37 = por %p35, %p36
      %p38 = scmp.ne.s32.totalorder %s30, %s33
      %p39 = scmp.eq.s32.totalorder %s20, 0
      %p40 = por %p38, %p39
      %p41 = scmp.ne.s32.totalorder %s30, %s33
      %p42 = scmp.eq.s32.totalorder %s25, 1
      %p43 = por %p41, %p42
      %p44 = scmp.ne.s32.totalorder %s33, %s34
      %p45 = scmp.eq.s32.totalorder %s25, 0
      %p46 = por %p44, %p45
      %p47 = scmp.ne.s32.totalorder %s33, %s34
      %p48 = scmp.eq.s32.totalorder %s26, 1
      %p49 = por %p47, %p48
      %p51 = scmp.ne.s32.totalorder %s34, %s50
      %p52 = scmp.eq.s32.totalorder %s26, 0
      %p53 = por %p51, %p52
      %s54 = ssub.s32 %s20, %s27
      %p55 = scmp.eq.s32.totalorder %s54, 0
      %s57 = sadd.s32 %s56, 1
      %s58 = scalar_select %p55, %s56, %s57
      %p61 = pneg %p55
      %p62 = scmp.eq.s32.totalorder %s20, 1
      %p63 = por %p61, %p62
      %p64 = scmp.ne.s32.totalorder %s56, %s59
      %p65 = scmp.eq.s32.totalorder %s20, 0
      %p66 = por %p64, %p65
      %p67 = scmp.ne.s32.totalorder %s56, %s59
      %p68 = scmp.eq.s32.totalorder %s25, 1
      %p69 = por %p67, %p68
      %p70 = scmp.ne.s32.totalorder %s59, %s60
      %p71 = scmp.eq.s32.totalorder %s25, 0
      %p72 = por %p70, %p71
      %p73 = scmp.ne.s32.totalorder %s59, %s60
      %p74 = scmp.eq.s32.totalorder %s26, 1
      %p75 = por %p73, %p74
      %p77 = scmp.ne.s32.totalorder %s60, %s76
      %p78 = scmp.eq.s32.totalorder %s26, 0
      %p79 = por %p77, %p78
      %s81 = sadd.s32 %s80, 1
      %p84 = scmp.eq.s32.totalorder %s20, 1
      %p85 = scmp.ne.s32.totalorder %s80, %s82
      %p86 = scmp.eq.s32.totalorder %s20, 0
      %p87 = por %p85, %p86
      %p88 = scmp.ne.s32.totalorder %s80, %s82
      %p89 = scmp.eq.s32.totalorder %s25, 1
      %p90 = por %p88, %p89
      %p91 = scmp.ne.s32.totalorder %s82, %s83
      %p92 = scmp.eq.s32.totalorder %s25, 0
      %p93 = por %p91, %p92
      %p94 = scmp.ne.s32.totalorder %s82, %s83
      %p95 = scmp.eq.s32.totalorder %s26, 1
      %p96 = por %p94, %p95
      %p98 = scmp.ne.s32.totalorder %s83, %s97
      %p99 = scmp.eq.s32.totalorder %s26, 0
      %p100 = por %p98, %p99
      %s102 = sadd.s32 %s101, 1
      %p105 = scmp.eq.s32.totalorder %s20, 1
      %p106 = scmp.ne.s32.totalorder %s101, %s103
      %p107 = scmp.eq.s32.totalorder %s20, 0
      %p108 = por %p106, %p107
      %p109 = scmp.ne.s32.totalorder %s101, %s103
      %p110 = scmp.eq.s32.totalorder %s25, 1
      %p111 = por %p109, %p110
      %p112 = scmp.ne.s32.totalorder %s103, %s104
      %p113 = scmp.eq.s32.totalorder %s25, 0
      %p114 = por %p112, %p113
      %p115 = scmp.ne.s32.totalorder %s103, %s104
      %p116 = scmp.eq.s32.totalorder %s26, 1
      %p117 = por %p115, %p116
      %p119 = scmp.ne.s32.totalorder %s104, %s118
      %p120 = scmp.eq.s32.totalorder %s26, 0
      %p121 = por %p119, %p120
      %s122 = ssub.s32 %s20, %s27
      %p123 = scmp.eq.s32.totalorder %s122, 0
      %s125 = sadd.s32 %s124, 1
      %s126 = scalar_select %p123, %s124, %s125
      %p129 = pneg %p123
      %p130 = scmp.eq.s32.totalorder %s20, 1
      %p131 = por %p129, %p130
      %p132 = scmp.ne.s32.totalorder %s124, %s127
      %p133 = scmp.eq.s32.totalorder %s20, 0
      %p134 = por %p132, %p133
      %p135 = scmp.ne.s32.totalorder %s124, %s127
      %p136 = scmp.eq.s32.totalorder %s25, 1
      %p137 = por %p135, %p136
      %p138 = scmp.ne.s32.totalorder %s127, %s128
      %p139 = scmp.eq.s32.totalorder %s25, 0
      %p140 = por %p138, %p139
      %p141 = scmp.ne.s32.totalorder %s127, %s128
      %p142 = scmp.eq.s32.totalorder %s26, 1
      %p143 = por %p141, %p142
      %p145 = scmp.ne.s32.totalorder %s128, %s144
      %p146 = scmp.eq.s32.totalorder %s26, 0
      %p147 = por %p145, %p146
      %p148 = scmp.le.s32.totalorder 1, %s20
      %p149 = scmp.lt.s32.totalorder %s20, 3
      %p150 = pnand %p148, %p149
      %p151 = pneg %p150
      // Predicated region
      $region9: #{tpu_custom_call.1} parent=5 // pred_check
        _
      $region10: #{tpu_custom_call.1} parent=5 // pred_check_branch
        %153 = sbr.rel (%p150) target = $region12
      $region11: #{tpu_custom_call.1} parent=5 // pred_region
        %s154 = ssub.s32 %s20, 1
        // Predicated region
        $region13: #{tpu_custom_call.1} parent=11 // pred_check
          %p155 = pneg %p93
        $region14: #{tpu_custom_call.1} parent=11 // pred_check_branch
          %157 = sbr.rel (%p155) target = $region16
        $region15: #{tpu_custom_call.1} parent=11 // pred_region
          %159 = vsyncadd [#allocation6], 0
          %s160 = sshll.u32 %s2, 4
          %s161 = int_to_ptr.hbm [resolvable:$true] %s160
          %s162 = sshll.u32 [#allocation7], 4
          %s163 = int_to_ptr.vmem [resolvable:$true] %s162
          %168 = dma.hbm_to_vmem [thread:$0]  %s161, 8192, %s163, [#allocation6], 256, 256, 16
        $region16: #{tpu_custom_call.1} parent=11 // pred_fallthru
          _
        // Predicated region
        $region17: #{tpu_custom_call.1} parent=11 // pred_check
          %p169 = pneg %p114
        $region18: #{tpu_custom_call.1} parent=11 // pred_check_branch
          %171 = sbr.rel (%p169) target = $region20
        $region19: #{tpu_custom_call.1} parent=11 // pred_region
          %173 = vsyncadd [#allocation9], 0
          %s175 = sshll.u32 %s3, 4
          %s176 = int_to_ptr.hbm [resolvable:$true] %s175
          %s177 = sshll.u32 [#allocation8], 4
          %s178 = int_to_ptr.vmem [resolvable:$true] %s177
          %180 = dma.hbm_to_vmem [thread:$0]  %s176, 128, %s178, [#allocation9]
        $region20: #{tpu_custom_call.1} parent=11 // pred_fallthru
          _
      $region12: #{tpu_custom_call.1} parent=5 // pred_fallthru
        _
      %p181 = scmp.lt.s32.totalorder %s20, 2
      // Predicated region
      $region21: #{tpu_custom_call.1} parent=5 // pred_check
        %p182 = pneg %p181
      $region22: #{tpu_custom_call.1} parent=5 // pred_check_branch
        %184 = sbr.rel (%p182) target = $region24
      $region23: #{tpu_custom_call.1} parent=5 // pred_region
        // Predicated region
        $region25: #{tpu_custom_call.1} parent=23 // pred_check
          %p185 = pneg %p40
        $region26: #{tpu_custom_call.1} parent=23 // pred_check_branch
          %187 = sbr.rel (%p185) target = $region28
        $region27: #{tpu_custom_call.1} parent=23 // pred_region
          %s188 = sand.u32 %s30, 1
          %s189 = scalar_lea.sflag [#allocation3], %s188
          %s190 = sand.u32 %s30, 1
          %s191 = smul.addr %s190, 16
          %s192 = scalar_lea.vmem [#allocation2], %s191
          %194 = vsyncadd %s189, 0
          %s195 = smul.addr %s20, 2
          %s196 = smul.addr %s195, 8
          %s197 = scalar_lea.hbm %s0, %s196
          %s198 = sshll.u32 %s197, 4
          %s199 = int_to_ptr.hbm [resolvable:$true] %s198
          %s200 = sshll.u32 %s192, 4
          %s201 = int_to_ptr.vmem [resolvable:$true] %s200
          %206 = dma.hbm_to_vmem [thread:$0]  %s199, 256, %s201, %s189, 128, 128, 8
        $region28: #{tpu_custom_call.1} parent=23 // pred_fallthru
          _
        // Predicated region
        $region29: #{tpu_custom_call.1} parent=23 // pred_check
          %p207 = pneg %p66
        $region30: #{tpu_custom_call.1} parent=23 // pred_check_branch
          %209 = sbr.rel (%p207) target = $region32
        $region31: #{tpu_custom_call.1} parent=23 // pred_region
          %s210 = sand.u32 %s20, 1
          %s211 = scalar_lea.sflag [#allocation6], %s210
          %s212 = sand.u32 %s56, 1
          %s213 = smul.addr %s212, 16
          %s214 = scalar_lea.vmem [#allocation5], %s213
          %216 = vsyncadd %s211, 0
          %s217 = smul.addr %s20, 2
          %s218 = smul.addr %s217, 8
          %s219 = scalar_lea.hbm %s1, %s218
          %s220 = sshll.u32 %s219, 4
          %s221 = int_to_ptr.hbm [resolvable:$true] %s220
          %s222 = sshll.u32 %s214, 4
          %s223 = int_to_ptr.vmem [resolvable:$true] %s222
          %228 = dma.hbm_to_vmem [thread:$0]  %s221, 256, %s223, %s211, 128, 128, 8
        $region32: #{tpu_custom_call.1} parent=23 // pred_fallthru
          _
      $region24: #{tpu_custom_call.1} parent=5 // pred_fallthru
        _
      %p229 = scmp.le.s32.totalorder 1, %s20
      %p230 = scmp.lt.s32.totalorder %s20, 3
      %p231 = pnand %p229, %p230
      %p232 = pneg %p231
      // Predicated region
      $region33: #{tpu_custom_call.1} parent=5 // pred_check
        _
      $region34: #{tpu_custom_call.1} parent=5 // pred_check_branch
        %234 = sbr.rel (%p231) target = $region36
      $region35: #{tpu_custom_call.1} parent=5 // pred_region
        %s235 = ssub.s32 %s20, 1
        %s236 = sand.u32 %s33, 1
        %s237 = scalar_lea.sflag [#allocation3], %s236
        %s238 = sand.u32 %s33, 1
        %s239 = smul.addr %s238, 16
        %s240 = scalar_lea.vmem [#allocation2], %s239
        // Predicated region
        $region37: #{tpu_custom_call.1} parent=35 // pred_check
          %p241 = pneg %p46
        $region38: #{tpu_custom_call.1} parent=35 // pred_check_branch
          %243 = sbr.rel (%p241) target = $region40
        $region39: #{tpu_custom_call.1} parent=35 // pred_region
          %245 = dma.done %s237, 256
        $region40: #{tpu_custom_call.1} parent=35 // pred_fallthru
          _
        %s246 = sand.u32 %s25, 1
        %s247 = scalar_lea.sflag [#allocation6], %s246
        %s248 = sand.u32 %s59, 1
        %s249 = smul.addr %s248, 16
        %s250 = scalar_lea.vmem [#allocation5], %s249
        // Predicated region
        $region41: #{tpu_custom_call.1} parent=35 // pred_check
          %p251 = pneg %p72
        $region42: #{tpu_custom_call.1} parent=35 // pred_check_branch
          %253 = sbr.rel (%p251) target = $region44
        $region43: #{tpu_custom_call.1} parent=35 // pred_region
          %255 = dma.done %s247, 256
        $region44: #{tpu_custom_call.1} parent=35 // pred_fallthru
          _
        // Predicated region
        $region45: #{tpu_custom_call.1} parent=35 // pred_check
          %p256 = pneg %p93
        $region46: #{tpu_custom_call.1} parent=35 // pred_check_branch
          %258 = sbr.rel (%p256) target = $region48
        $region47: #{tpu_custom_call.1} parent=35 // pred_region
          %260 = dma.done [#allocation6], 8192
        $region48: #{tpu_custom_call.1} parent=35 // pred_fallthru
          _
        // Predicated region
        $region49: #{tpu_custom_call.1} parent=35 // pred_check
          %p261 = pneg %p114
        $region50: #{tpu_custom_call.1} parent=35 // pred_check_branch
          %263 = sbr.rel (%p261) target = $region52
        $region51: #{tpu_custom_call.1} parent=35 // pred_region
          %265 = dma.done [#allocation9], 128
        $region52: #{tpu_custom_call.1} parent=35 // pred_fallthru
          _
        %s266 = sand.u32 %s33, 1
        %s267 = scalar_lea.sflag [#allocation3], %s266
        %s268 = sand.u32 %s33, 1
        %s269 = smul.addr %s268, 16
        %s270 = scalar_lea.vmem [#allocation2], %s269
        %p271 = pneg %p46
        %p272 = pneg %p43
        %s273 = sand.u32 %s25, 1
        %s274 = scalar_lea.sflag [#allocation6], %s273
        %s275 = sand.u32 %s59, 1
        %s276 = smul.addr %s275, 16
        %s277 = scalar_lea.vmem [#allocation5], %s276
        %p278 = pneg %p72
        %p279 = pneg %p69
        %p280 = pneg %p93
        %p281 = pneg %p90
        %p282 = pneg %p114
        %p283 = pneg %p111
        %p284 = pneg %p140
        %p285 = pneg %p137
        %s286 = sand.u32 %s127, 1
        %s287 = scalar_lea.sflag [#allocation4], %s286
        %s288 = sand.u32 %s127, 1
        %s289 = smul.addr %s288, 16
        %s290 = scalar_lea.vmem [#allocation10], %s289
        %v291 = vld [vmem:[%s240] sm:$0xff]
        %v292 = vld [vmem:[%s240 + $0x8] sm:$0xff]
        %v293 = vld [vmem:[%s250] sm:$0xff]
        %v294 = vld [vmem:[%s250 + $0x8] sm:$0xff]
        %v295 = vld [vmem:[#allocation7] sm:$0xff]
        %v296 = vld [vmem:[#allocation7 + $0x8] sm:$0xff]
        %v297 = vld [vmem:[#allocation7 + $0x10] sm:$0xff]
        %v298 = vld [vmem:[#allocation7 + $0x18] sm:$0xff]
        %v299 = vld [vmem:[#allocation7 + $0x20] sm:$0xff]
        %v300 = vld [vmem:[#allocation7 + $0x28] sm:$0xff]
        %v301 = vld [vmem:[#allocation7 + $0x30] sm:$0xff]
        %v302 = vld [vmem:[#allocation7 + $0x38] sm:$0xff]
        %v303 = vld [vmem:[#allocation7 + $0x40] sm:$0xff]
        %v304 = vld [vmem:[#allocation7 + $0x48] sm:$0xff]
        %v305 = vld [vmem:[#allocation7 + $0x50] sm:$0xff]
        %v306 = vld [vmem:[#allocation7 + $0x58] sm:$0xff]
        %v307 = vld [vmem:[#allocation7 + $0x60] sm:$0xff]
        %v308 = vld [vmem:[#allocation7 + $0x68] sm:$0xff]
        %v309 = vld [vmem:[#allocation7 + $0x70] sm:$0xff]
        %v310 = vld [vmem:[#allocation7 + $0x78] sm:$0xff]
        %v311 = vld [vmem:[#allocation7 + $0x80] sm:$0xff]
        %v312 = vld [vmem:[#allocation7 + $0x88] sm:$0xff]
        %v313 = vld [vmem:[#allocation7 + $0x90] sm:$0xff]
        %v314 = vld [vmem:[#allocation7 + $0x98] sm:$0xff]
        %v315 = vld [vmem:[#allocation7 + $0xa0] sm:$0xff]
        %v316 = vld [vmem:[#allocation7 + $0xa8] sm:$0xff]
        %v317 = vld [vmem:[#allocation7 + $0xb0] sm:$0xff]
        %v318 = vld [vmem:[#allocation7 + $0xb8] sm:$0xff]
        %v319 = vld [vmem:[#allocation7 + $0xc0] sm:$0xff]
        %v320 = vld [vmem:[#allocation7 + $0xc8] sm:$0xff]
        %v321 = vld [vmem:[#allocation7 + $0xd0] sm:$0xff]
        %v322 = vld [vmem:[#allocation7 + $0xd8] sm:$0xff]
        %v323 = vld [vmem:[#allocation7 + $0xe0] sm:$0xff]
        %v324 = vld [vmem:[#allocation7 + $0xe8] sm:$0xff]
        %v325 = vld [vmem:[#allocation7 + $0xf0] sm:$0xff]
        %v326 = vld [vmem:[#allocation7 + $0xf8] sm:$0xff]
        %327 = vmatpush.msra.mxu0 %v325
        %328 = vmatpush.msra.mxu0 %v323
        %329 = vmatpush.msra.mxu0 %v321
        %330 = vmatpush.msra.mxu0 %v319
        %331 = vmatpush.msra.mxu0 %v317
        %332 = vmatpush.msra.mxu0 %v315
        %333 = vmatpush.msra.mxu0 %v313
        %334 = vmatpush.msra.mxu0 %v311
        %335 = vmatpush.msra.mxu0 %v309
        %336 = vmatpush.msra.mxu0 %v307
        %337 = vmatpush.msra.mxu0 %v305
        %338 = vmatpush.msra.mxu0 %v303
        %339 = vmatpush.msra.mxu0 %v301
        %340 = vmatpush.msra.mxu0 %v299
        %341 = vmatpush.msra.mxu0 %v297
        %342 = vmatpush.msra.mxu0 %v295
        %343 = vmatmul.f32.gmra.mxu0 %v293
        %v344 = vpop.f32.mrf.mxu0
        %v345 = vadd.f32 0.0, %v344
        %346 = vmatmul.f32.gmra.mxu0 %v294
        %v347 = vpop.f32.mrf.mxu0
        %v348 = vadd.f32 0.0, %v347
        %349 = vdwg.mxu0
        %350 = vmatpush.msra.mxu0 %v326
        %351 = vmatpush.msra.mxu0 %v324
        %352 = vmatpush.msra.mxu0 %v322
        %353 = vmatpush.msra.mxu0 %v320
        %354 = vmatpush.msra.mxu0 %v318
        %355 = vmatpush.msra.mxu0 %v316
        %356 = vmatpush.msra.mxu0 %v314
        %357 = vmatpush.msra.mxu0 %v312
        %358 = vmatpush.msra.mxu0 %v310
        %359 = vmatpush.msra.mxu0 %v308
        %360 = vmatpush.msra.mxu0 %v306
        %361 = vmatpush.msra.mxu0 %v304
        %362 = vmatpush.msra.mxu0 %v302
        %363 = vmatpush.msra.mxu0 %v300
        %364 = vmatpush.msra.mxu0 %v298
        %365 = vmatpush.msra.mxu0 %v296
        %366 = vmatmul.f32.gmra.mxu0 %v293
        %v367 = vpop.f32.mrf.mxu0
        %v368 = vadd.f32 0.0, %v367
        %369 = vmatmul.f32.gmra.mxu0 %v294
        %v370 = vpop.f32.mrf.mxu0
        %v371 = vadd.f32 0.0, %v370
        %372 = vdwg.mxu0
        %v373 = vld [vmem:[#allocation8] sm:$0x1]
        %v374 = vld [vmem:[#allocation8 + $0x1] sm:$0x1]
        %v375 = vld [vmem:[#allocation8 + $0x2] sm:$0x1]
        %v376 = vld [vmem:[#allocation8 + $0x3] sm:$0x1]
        %v377 = vperm.slane %v373, 0
        %vm378 = vcmask 130048
        %v380 = vsel %vm378, %v291, 0
        %v383 = vsel %vm378, %v292, 0
        %385 = vmatpush.msra.mxu0 0.0
        %386 = vmatpush.msra.mxu0 0.0
        %387 = vmatpush.msra.mxu0 0.0
        %388 = vmatpush.msra.mxu0 0.0
        %389 = vmatpush.msra.mxu0 0.0
        %390 = vmatpush.msra.mxu0 0.0
        %391 = vmatpush.msra.mxu0 0.0
        %392 = vmatpush.msra.mxu0 0.0
        %393 = vmatpush.msra.mxu0 0.0
        %394 = vmatpush.msra.mxu0 0.0
        %395 = vmatpush.msra.mxu0 0.0
        %396 = vmatpush.msra.mxu0 0.0
        %397 = vmatpush.msra.mxu0 0.0
        %398 = vmatpush.msra.mxu0 0.0
        %399 = vmatpush.msra.mxu0 %v348
        %400 = vmatpush.msra.mxu0 %v345
        %401 = vmatmul.f32.gmra.mxu0 %v380
        %v402 = vpop.f32.mrf.mxu0
        %v403 = vadd.f32 %v377, %v402
        %404 = vmatmul.f32.gmra.mxu0 %v383
        %v405 = vpop.f32.mrf.mxu0
        %v406 = vadd.f32 %v377, %v405
        %407 = vdwg.mxu0
        %v408 = vmax.f32 %v403, 0.0
        %v409 = vmax.f32 %v406, 0.0
        %v410 = vperm.slane %v374, 0
        %v411 = vadd.f32 %v368, %v410
        %v412 = vadd.f32 %v371, %v410
        %v413 = vmax.f32 %v411, 0.0
        %v414 = vmax.f32 %v412, 0.0
        %v415 = vadd.f32 %v408, %v413
        %v416 = vadd.f32 %v409, %v414
        %v417 = vperm.slane %v375, 0
        %v418 = vmul.f32 %v415, %v417
        %v419 = vmul.f32 %v416, %v417
        %v420 = vperm.slane %v376, 0
        %v421 = vadd.f32 %v418, %v420
        %v422 = vadd.f32 %v419, %v420
        %s423 = scalar_lea.vmem [#allocation7], 256
        %v424 = vld [vmem:[%s423] sm:$0xff]
        %v425 = vld [vmem:[%s423 + $0x8] sm:$0xff]
        %v426 = vld [vmem:[%s423 + $0x10] sm:$0xff]
        %v427 = vld [vmem:[%s423 + $0x18] sm:$0xff]
        %v428 = vld [vmem:[%s423 + $0x20] sm:$0xff]
        %v429 = vld [vmem:[%s423 + $0x28] sm:$0xff]
        %v430 = vld [vmem:[%s423 + $0x30] sm:$0xff]
        %v431 = vld [vmem:[%s423 + $0x38] sm:$0xff]
        %v432 = vld [vmem:[%s423 + $0x40] sm:$0xff]
        %v433 = vld [vmem:[%s423 + $0x48] sm:$0xff]
        %v434 = vld [vmem:[%s423 + $0x50] sm:$0xff]
        %v435 = vld [vmem:[%s423 + $0x58] sm:$0xff]
        %v436 = vld [vmem:[%s423 + $0x60] sm:$0xff]
        %v437 = vld [vmem:[%s423 + $0x68] sm:$0xff]
        %v438 = vld [vmem:[%s423 + $0x70] sm:$0xff]
        %v439 = vld [vmem:[%s423 + $0x78] sm:$0xff]
        %v440 = vld [vmem:[%s423 + $0x80] sm:$0xff]
        %v441 = vld [vmem:[%s423 + $0x88] sm:$0xff]
        %v442 = vld [vmem:[%s423 + $0x90] sm:$0xff]
        %v443 = vld [vmem:[%s423 + $0x98] sm:$0xff]
        %v444 = vld [vmem:[%s423 + $0xa0] sm:$0xff]
        %v445 = vld [vmem:[%s423 + $0xa8] sm:$0xff]
        %v446 = vld [vmem:[%s423 + $0xb0] sm:$0xff]
        %v447 = vld [vmem:[%s423 + $0xb8] sm:$0xff]
        %v448 = vld [vmem:[%s423 + $0xc0] sm:$0xff]
        %v449 = vld [vmem:[%s423 + $0xc8] sm:$0xff]
        %v450 = vld [vmem:[%s423 + $0xd0] sm:$0xff]
        %v451 = vld [vmem:[%s423 + $0xd8] sm:$0xff]
        %v452 = vld [vmem:[%s423 + $0xe0] sm:$0xff]
        %v453 = vld [vmem:[%s423 + $0xe8] sm:$0xff]
        %v454 = vld [vmem:[%s423 + $0xf0] sm:$0xff]
        %v455 = vld [vmem:[%s423 + $0xf8] sm:$0xff]
        %456 = vmatpush.msra.mxu0 %v454
        %457 = vmatpush.msra.mxu0 %v452
        %458 = vmatpush.msra.mxu0 %v450
        %459 = vmatpush.msra.mxu0 %v448
        %460 = vmatpush.msra.mxu0 %v446
        %461 = vmatpush.msra.mxu0 %v444
        %462 = vmatpush.msra.mxu0 %v442
        %463 = vmatpush.msra.mxu0 %v440
        %464 = vmatpush.msra.mxu0 %v438
        %465 = vmatpush.msra.mxu0 %v436
        %466 = vmatpush.msra.mxu0 %v434
        %467 = vmatpush.msra.mxu0 %v432
        %468 = vmatpush.msra.mxu0 %v430
        %469 = vmatpush.msra.mxu0 %v428
        %470 = vmatpush.msra.mxu0 %v426
        %471 = vmatpush.msra.mxu0 %v424
        %472 = vmatmul.f32.gmra.mxu0 %v421
        %v473 = vpop.f32.mrf.mxu0
        %v474 = vadd.f32 0.0, %v473
        %475 = vmatmul.f32.gmra.mxu0 %v422
        %v476 = vpop.f32.mrf.mxu0
        %v477 = vadd.f32 0.0, %v476
        %478 = vdwg.mxu0
        %479 = vmatpush.msra.mxu0 %v455
        %480 = vmatpush.msra.mxu0 %v453
        %481 = vmatpush.msra.mxu0 %v451
        %482 = vmatpush.msra.mxu0 %v449
        %483 = vmatpush.msra.mxu0 %v447
        %484 = vmatpush.msra.mxu0 %v445
        %485 = vmatpush.msra.mxu0 %v443
        %486 = vmatpush.msra.mxu0 %v441
        %487 = vmatpush.msra.mxu0 %v439
        %488 = vmatpush.msra.mxu0 %v437
        %489 = vmatpush.msra.mxu0 %v435
        %490 = vmatpush.msra.mxu0 %v433
        %491 = vmatpush.msra.mxu0 %v431
        %492 = vmatpush.msra.mxu0 %v429
        %493 = vmatpush.msra.mxu0 %v427
        %494 = vmatpush.msra.mxu0 %v425
        %495 = vmatmul.f32.gmra.mxu0 %v421
        %v496 = vpop.f32.mrf.mxu0
        %v497 = vadd.f32 0.0, %v496
        %498 = vmatmul.f32.gmra.mxu0 %v422
        %v499 = vpop.f32.mrf.mxu0
        %v500 = vadd.f32 0.0, %v499
        %501 = vdwg.mxu0
        %v502 = vld [vmem:[#allocation8 + $0x4] sm:$0x1]
        %v503 = vld [vmem:[#allocation8 + $0x5] sm:$0x1]
        %v504 = vld [vmem:[#allocation8 + $0x6] sm:$0x1]
        %v505 = vld [vmem:[#allocation8 + $0x7] sm:$0x1]
        %v506 = vperm.slane %v502, 0
        %507 = vmatpush.msra.mxu0 0.0
        %508 = vmatpush.msra.mxu0 0.0
        %509 = vmatpush.msra.mxu0 0.0
        %510 = vmatpush.msra.mxu0 0.0
        %511 = vmatpush.msra.mxu0 0.0
        %512 = vmatpush.msra.mxu0 0.0
        %513 = vmatpush.msra.mxu0 0.0
        %514 = vmatpush.msra.mxu0 0.0
        %515 = vmatpush.msra.mxu0 0.0
        %516 = vmatpush.msra.mxu0 0.0
        %517 = vmatpush.msra.mxu0 0.0
        %518 = vmatpush.msra.mxu0 0.0
        %519 = vmatpush.msra.mxu0 0.0
        %520 = vmatpush.msra.mxu0 0.0
        %521 = vmatpush.msra.mxu0 %v477
        %522 = vmatpush.msra.mxu0 %v474
        %523 = vmatmul.f32.gmra.mxu0 %v380
        %v524 = vpop.f32.mrf.mxu0
        %v525 = vadd.f32 %v506, %v524
        %526 = vmatmul.f32.gmra.mxu0 %v383
        %v527 = vpop.f32.mrf.mxu0
        %v528 = vadd.f32 %v506, %v527
        %529 = vdwg.mxu0
        %v530 = vmax.f32 %v525, 0.0
        %v531 = vmax.f32 %v528, 0.0
        %v532 = vperm.slane %v503, 0
        %v533 = vadd.f32 %v497, %v532
        %v534 = vadd.f32 %v500, %v532
        %v535 = vmax.f32 %v533, 0.0
        %v536 = vmax.f32 %v534, 0.0
        %v537 = vadd.f32 %v530, %v535
        %v538 = vadd.f32 %v531, %v536
        %v539 = vperm.slane %v504, 0
        %v540 = vmul.f32 %v537, %v539
        %v541 = vmul.f32 %v538, %v539
        %v542 = vperm.slane %v505, 0
        %v543 = vadd.f32 %v540, %v542
        %v544 = vadd.f32 %v541, %v542
        %545 = vst [vmem:[%s290] sm:$0xff] %v543
        %546 = vst [vmem:[%s290 + $0x8] sm:$0xff] %v544
        %s547 = sand.u32 %s127, 1
        %s548 = scalar_lea.sflag [#allocation4], %s547
        %s549 = sand.u32 %s127, 1
        %s550 = smul.addr %s549, 16
        %s551 = scalar_lea.vmem [#allocation10], %s550
        // Predicated region
        $region53: #{tpu_custom_call.1} parent=35 // pred_check
          %p552 = pneg %p137
        $region54: #{tpu_custom_call.1} parent=35 // pred_check_branch
          %554 = sbr.rel (%p552) target = $region56
        $region55: #{tpu_custom_call.1} parent=35 // pred_region
          %556 = vsyncadd %s548, 0
          %s557 = smul.addr %s25, 2
          %s558 = smul.addr %s557, 8
          %s559 = scalar_lea.hbm %s4, %s558
          %s560 = sshll.u32 %s551, 4
          %s561 = int_to_ptr.vmem [resolvable:$true] %s560
          %s562 = sshll.u32 %s559, 4
          %s563 = int_to_ptr.hbm [resolvable:$true] %s562
          %568 = dma.vmem_to_hbm [thread:$0]  %s561, 256, %s563, %s548, 128, 128, 8
        $region56: #{tpu_custom_call.1} parent=35 // pred_fallthru
          _
      $region36: #{tpu_custom_call.1} parent=5 // pred_fallthru
        _
      %p569 = scmp.le.s32.totalorder 2, %s20
      // Predicated region
      $region57: #{tpu_custom_call.1} parent=5 // pred_check
        %p570 = pneg %p569
      $region58: #{tpu_custom_call.1} parent=5 // pred_check_branch
        %572 = sbr.rel (%p570) target = $region60
      $region59: #{tpu_custom_call.1} parent=5 // pred_region
        %s573 = ssub.s32 %s20, 2
        // Predicated region
        $region61: #{tpu_custom_call.1} parent=59 // pred_check
          %p574 = pneg %p143
        $region62: #{tpu_custom_call.1} parent=59 // pred_check_branch
          %576 = sbr.rel (%p574) target = $region64
        $region63: #{tpu_custom_call.1} parent=59 // pred_region
          %s577 = sand.u32 %s128, 1
          %s578 = scalar_lea.sflag [#allocation4], %s577
          %s579 = sand.u32 %s128, 1
          %s580 = smul.addr %s579, 16
          %s581 = scalar_lea.vmem [#allocation10], %s580
          %583 = dma.done %s578, 256
        $region64: #{tpu_custom_call.1} parent=59 // pred_fallthru
          _
      $region60: #{tpu_custom_call.1} parent=5 // pred_fallthru
        _
    $region6: #{tpu_custom_call.1} parent=1 // loop_footer
      %s24 = sadd.s32 1, %s20
    $region7: #{tpu_custom_call.1} parent=1 // loop_footer_branch
      %19 = sbr.rel target = $region3
    $region8: #{tpu_custom_call.1} parent=1 // loop_exit
      _
    %584 = vsyncpa [#allocation3], 1
    %s585 = scalar_lea.sflag [#allocation3], 1
    %586 = vsyncpa %s585, 1
    %587 = vsyncpa [#allocation6], 1
    %s588 = scalar_lea.sflag [#allocation6], 1
    %589 = vsyncpa %s588, 1
    %590 = vsyncpa [#allocation9], 1
    %591 = vsyncpa [#allocation4], 1
    %s592 = scalar_lea.sflag [#allocation4], 1
    %593 = vsyncpa %s592, 1

</llo_original>
